<compile_context>
chip_gen: v5e
topology: v5e:2x2
jax: 0.10.0
libtpu: 0.0.40
codegen_flags: <defaults>
</compile_context>

<pallas_src>
import jax
import jax.numpy as jnp
from jax.experimental import pallas as pl
from jax.experimental.pallas import tpu as pltpu


# ----------------------------- Pallas kernel -------------------------------

def _basic_block_kernel(x_ref, m1_ref, m2_ref, o_ref, xh_ref, mid_ref):
    # x_ref  : (NB, H, W*Cin)          bf16 input, lane-folded (w, c) -> w*C + c
    # m1_ref : (3*W*Cin,  W*Cout)      bf16 banded conv1 weights (ky concat on K)
    # m2_ref : (3*W*Cout, W*Cout)      bf16 banded conv2 weights
    # o_ref  : (NB, H, W*Cout)         output
    # xh_ref : (NB*(H+2), W*Cin)       VMEM slab: batch stacked with zero seps
    # mid_ref: (NB*(H+2), W*Cout)      VMEM slab: relu(conv1), zero seps
    NB, H, WCin = x_ref.shape
    WCout = o_ref.shape[2]
    S = H + 2                      # per-image stride in the stacked slab
    Mrows = NB * S                 # slab height
    Mout = Mrows - 2               # rows fed to the matmuls

    zin = jnp.zeros((1, WCin), xh_ref.dtype)
    zout = jnp.zeros((1, WCout), mid_ref.dtype)

    # ---- stage the batch into the zero-separated slab (batch folded into M)
    # Separator rows are rewritten every step (cheap) so this stays correct
    # under "parallel" grid semantics / multi-core scratch.
    for i in range(NB):
        xh_ref[i * S:i * S + 1, :] = zin
        xh_ref[i * S + 1:i * S + 1 + H, :] = x_ref[i]
        xh_ref[i * S + 1 + H:i * S + 2 + H, :] = zin

    # ---- conv1 + relu1 : one K = 3*W*Cin MXU matmul over the stacked slab --
    xcat = jnp.concatenate(
        [xh_ref[0:Mout, :], xh_ref[1:Mout + 1, :], xh_ref[2:Mout + 2, :]],
        axis=1)                                            # (Mout, 3*W*Cin)
    acc = jnp.dot(xcat, m1_ref[...], preferred_element_type=jnp.float32)

    # ---- stage relu(conv1) into the second slab (never leaves VMEM) --------
    mid_ref[0:1, :] = zout
    mid_ref[1:1 + Mout, :] = jnp.maximum(acc, 0.0).astype(mid_ref.dtype)
    mid_ref[Mrows - 1:Mrows, :] = zout
    # Re-zero the interior separator rows the bulk store just clobbered.
    for i in range(NB - 1):
        r = i * S + H + 1
        mid_ref[r:r + 2, :] = jnp.zeros((2, WCout), mid_ref.dtype)

    # ---- conv2 + residual + relu2 ------------------------------------------
    mcat = jnp.concatenate(
        [mid_ref[0:Mout, :], mid_ref[1:Mout + 1, :], mid_ref[2:Mout + 2, :]],
        axis=1)                                            # (Mout, 3*W*Cout)
    acc2 = jnp.dot(mcat, m2_ref[...], preferred_element_type=jnp.float32)

    for i in range(NB):
        res = acc2[i * S:i * S + H, :] + x_ref[i].astype(jnp.float32)
        o_ref[i] = jnp.maximum(res, 0.0).astype(o_ref.dtype)


# ------------------------------ weight prep ---------------------------------

def _banded_conv_weights(w_hwio, W):
    """(3, 3, Cin, Cout) HWIO weights -> (3, W*Cin, W*Cout) block-tridiagonal.

    M_ky[w'*Cin+ci, w*Cout+co] = w[ky, w'-w+1, ci, co] when |w'-w| <= 1, else 0,
    so a 3x3 conv over a lane-folded (rows, W*Cin) slab is
    sum_ky  slab[ky:ky+rows, :] @ M_ky  (W-direction zero padding is implicit).
    """
    KH, KW, Cin, Cout = w_hwio.shape
    wp = jnp.arange(W)[:, None]                     # source column w'
    wo = jnp.arange(W)[None, :]                     # output column w
    kx = wp - wo + 1                                # tap index along W
    valid = (kx >= 0) & (kx < KW)
    blocks = w_hwio[:, jnp.clip(kx, 0, KW - 1), :, :]        # (3, W, W, Cin, Cout)
    blocks = jnp.where(valid[None, :, :, None, None], blocks, 0.0)
    return blocks.transpose(0, 1, 3, 2, 4).reshape(KH, W * Cin, W * Cout)


def prepare_block_weights(w1_oihw, w2_oihw, W, compute_dtype=jnp.bfloat16):
    """Build the (3*W*Cin, W*Cout) K-concatenated slabs.

    Call ONCE per weight set (e.g. at model init) and reuse; rebuilding per
    forward would cost more than the kernel itself at small shapes.
    """
    w1 = jnp.transpose(w1_oihw, (2, 3, 1, 0))   # OIHW -> HWIO
    w2 = jnp.transpose(w2_oihw, (2, 3, 1, 0))
    Cin, Cmid = w1.shape[2], w1.shape[3]
    Cout = w2.shape[3]
    m1 = _banded_conv_weights(w1, W).reshape(3 * W * Cin, W * Cmid)
    m2 = _banded_conv_weights(w2, W).reshape(3 * W * Cmid, W * Cout)
    return m1.astype(compute_dtype), m2.astype(compute_dtype)
    # TODO(synk): for large C / W the banded slab is ~3/W dense and O((W*C)^2)
    # VMEM; switch to a dense-K im2row (K = 3*Cin) or pltpu.roll-based compact
    # weights before using real ResNet channel counts.


# ------------------------------ JAX wrappers --------------------------------

def basic_block_folded(x_folded, m1, m2, *, images_per_block=None,
                       out_dtype=jnp.float32):
    """Fused BasicBlock on lane-folded activations.

    x_folded: (N, H, W*Cin) in compute dtype (bf16). Returns (N, H, W*Cout).
    Chained blocks should stay in this layout to avoid NCHW<->NHWC round trips.
    """
    N, H, WCin = x_folded.shape
    WCout = m1.shape[1]
    NB = N if images_per_block is None else images_per_block
    assert N % NB == 0, "images_per_block must divide N"
    num_blocks = N // NB

    return pl.pallas_call(
        _basic_block_kernel,
        out_shape=jax.ShapeDtypeStruct((N, H, WCout), out_dtype),
        grid=(num_blocks,),
        in_specs=[
            pl.BlockSpec((NB, H, WCin), lambda g: (g, 0, 0)),
            pl.BlockSpec(m1.shape, lambda g: (0, 0)),
            pl.BlockSpec(m2.shape, lambda g: (0, 0)),
        ],
        out_specs=pl.BlockSpec((NB, H, WCout), lambda g: (g, 0, 0)),
        scratch_shapes=[
            pltpu.VMEM((NB * (H + 2), WCin), x_folded.dtype),
            pltpu.VMEM((NB * (H + 2), WCout), x_folded.dtype),
        ],
        compiler_params=pltpu.CompilerParams(
            dimension_semantics=("parallel",)),
    )(x_folded, m1, m2)


def basic_block_forward(x_nchw, w1_oihw, w2_oihw, *, compute_dtype=jnp.bfloat16,
                        out_dtype=None, images_per_block=None):
    """BasicBlock forward. x: NCHW (PyTorch convention), weights: OIHW."""
    N, Cin, H, W = x_nchw.shape
    Cout = w1_oihw.shape[0]
    assert Cin == Cout, "default BasicBlock (downsample=None) needs inplanes==planes"
    out_dtype = x_nchw.dtype if out_dtype is None else out_dtype

    m1, m2 = prepare_block_weights(w1_oihw, w2_oihw, W, compute_dtype)
    x = jnp.transpose(x_nchw, (0, 2, 3, 1)).reshape(N, H, W * Cin)
    x = x.astype(compute_dtype)

    out = basic_block_folded(x, m1, m2, images_per_block=images_per_block,
                             out_dtype=out_dtype)

    # TODO(synk): stride>1 / downsample / PReLU / skip_last_relu variants and
    # H-row tiling for large spatial sizes are not implemented.
    out = out.reshape(N, H, W, Cout)
    return jnp.transpose(out, (0, 3, 1, 2))                  # back to NCHW


# ---------------------------------- main ------------------------------------

if __name__ == "__main__":
    key = jax.random.PRNGKey(0)
    k_x, k_w1, k_w2 = jax.random.split(key, 3)

    N, C, H, W = 2, 8, 16, 16          # inplanes == planes (stride=1, no downsample)
    planes = C

    x = jax.random.normal(k_x, (N, C, H, W), jnp.float32)
    w1 = jax.random.normal(k_w1, (planes, C, 3, 3), jnp.float32) * 0.1       # conv1.weight
    w2 = jax.random.normal(k_w2, (planes, planes, 3, 3), jnp.float32) * 0.1  # conv2.weight

    out = jax.block_until_ready(basic_block_forward(x, w1, w2))

    # Reference with matching precision (bf16 operands, f32 accumulation,
    # bf16-rounded intermediate) through XLA convolutions.
    xb = x.astype(jnp.bfloat16).astype(jnp.float32)
    w1b = w1.astype(jnp.bfloat16).astype(jnp.float32)
    w2b = w2.astype(jnp.bfloat16).astype(jnp.float32)
    dn = ("NCHW", "OIHW", "NCHW")
    mid = jax.nn.relu(jax.lax.conv_general_dilated(
        xb, w1b, (1, 1), ((1, 1), (1, 1)), dimension_numbers=dn))
    mid = mid.astype(jnp.bfloat16).astype(jnp.float32)
    ref = jax.nn.relu(jax.lax.conv_general_dilated(
        mid, w2b, (1, 1), ((1, 1), (1, 1)), dimension_numbers=dn) + xb)

    assert out.shape == (N, planes, H, W)
    assert jnp.allclose(out, ref, atol=5e-3, rtol=5e-3), \
        float(jnp.max(jnp.abs(out - ref)))

    # Also exercise the multi-step grid path (one image per step, scratch reuse).
    out2 = jax.block_until_ready(
        basic_block_forward(x, w1, w2, images_per_block=1))
    assert jnp.allclose(out2, ref, atol=5e-3, rtol=5e-3), \
        float(jnp.max(jnp.abs(out2 - ref)))

    print("KERNEL_OK")
</pallas_src>

<mosaic_0001>
module attributes {stable_mosaic.version = 11 : i64} {
  func.func @_basic_block_kernel(%arg0: i32, %arg1: memref<2x16x128xbf16, #tpu.memory_space<vmem>>, %arg2: memref<384x128xbf16, #tpu.memory_space<vmem>>, %arg3: memref<384x128xbf16, #tpu.memory_space<vmem>>, %arg4: memref<2x16x128xf32, #tpu.memory_space<vmem>>, %arg5: memref<36x128xbf16, #tpu.memory_space<vmem>>, %arg6: memref<36x128xbf16, #tpu.memory_space<vmem>>) attributes {dimension_semantics = [#tpu.dimension_semantics<parallel>], iteration_bounds = array<i64: 1>, scalar_prefetch = 0 : i64, scratch_operands = 2 : i64, tpu.core_type = #tpu.core_type<tc>, window_params = [{transform_indices = @transform_0, window_bounds = array<i64: 2, 16, 128>}, {pipeline_mode = #tpu.pipeline_mode<synchronous>, transform_indices = @transform_1, window_bounds = array<i64: 384, 128>}, {pipeline_mode = #tpu.pipeline_mode<synchronous>, transform_indices = @transform_2, window_bounds = array<i64: 384, 128>}, {transform_indices = @transform_3, window_bounds = array<i64: 2, 16, 128>}]} {
    %cst = arith.constant 0.000000e+00 : bf16
    %0 = vector.broadcast %cst : bf16 to vector<1x128xbf16>
    %cst_0 = arith.constant 0.000000e+00 : bf16
    %1 = vector.broadcast %cst_0 : bf16 to vector<1x128xbf16>
    %c0 = arith.constant 0 : index
    %c0_1 = arith.constant 0 : index
    %2 = vector.load %arg5[%c0, %c0_1] : memref<36x128xbf16, #tpu.memory_space<vmem>>, vector<1x128xbf16>
    tpu.vector_store %arg5[%c0, %c0_1], %0 {strides = array<i32>} : memref<36x128xbf16, #tpu.memory_space<vmem>>, vector<1x128xbf16>,
    %c0_2 = arith.constant 0 : index
    %c0_3 = arith.constant 0 : index
    %c0_4 = arith.constant 0 : index
    %3 = vector.load %arg1[%c0_2, %c0_3, %c0_4] : memref<2x16x128xbf16, #tpu.memory_space<vmem>>, vector<1x16x128xbf16>
    %4 = vector.shape_cast %3 : vector<1x16x128xbf16> to vector<16x128xbf16>
    %c1 = arith.constant 1 : index
    %c0_5 = arith.constant 0 : index
    %5 = vector.load %arg5[%c1, %c0_5] : memref<36x128xbf16, #tpu.memory_space<vmem>>, vector<16x128xbf16>
    tpu.vector_store %arg5[%c1, %c0_5], %4 {strides = array<i32>} : memref<36x128xbf16, #tpu.memory_space<vmem>>, vector<16x128xbf16>,
    %c17 = arith.constant 17 : index
    %c0_6 = arith.constant 0 : index
    %6 = vector.load %arg5[%c17, %c0_6] : memref<36x128xbf16, #tpu.memory_space<vmem>>, vector<1x128xbf16>
    tpu.vector_store %arg5[%c17, %c0_6], %0 {strides = array<i32>} : memref<36x128xbf16, #tpu.memory_space<vmem>>, vector<1x128xbf16>,
    %c18 = arith.constant 18 : index
    %c0_7 = arith.constant 0 : index
    %7 = vector.load %arg5[%c18, %c0_7] : memref<36x128xbf16, #tpu.memory_space<vmem>>, vector<1x128xbf16>
    tpu.vector_store %arg5[%c18, %c0_7], %0 {strides = array<i32>} : memref<36x128xbf16, #tpu.memory_space<vmem>>, vector<1x128xbf16>,
    %c1_8 = arith.constant 1 : index
    %c0_9 = arith.constant 0 : index
    %c0_10 = arith.constant 0 : index
    %8 = vector.load %arg1[%c1_8, %c0_9, %c0_10] : memref<2x16x128xbf16, #tpu.memory_space<vmem>>, vector<1x16x128xbf16>
    %9 = vector.shape_cast %8 : vector<1x16x128xbf16> to vector<16x128xbf16>
    %c19 = arith.constant 19 : index
    %c0_11 = arith.constant 0 : index
    %10 = vector.load %arg5[%c19, %c0_11] : memref<36x128xbf16, #tpu.memory_space<vmem>>, vector<16x128xbf16>
    tpu.vector_store %arg5[%c19, %c0_11], %9 {strides = array<i32>} : memref<36x128xbf16, #tpu.memory_space<vmem>>, vector<16x128xbf16>,
    %c35 = arith.constant 35 : index
    %c0_12 = arith.constant 0 : index
    %11 = vector.load %arg5[%c35, %c0_12] : memref<36x128xbf16, #tpu.memory_space<vmem>>, vector<1x128xbf16>
    tpu.vector_store %arg5[%c35, %c0_12], %0 {strides = array<i32>} : memref<36x128xbf16, #tpu.memory_space<vmem>>, vector<1x128xbf16>,
    %c0_13 = arith.constant 0 : index
    %c0_14 = arith.constant 0 : index
    %12 = vector.load %arg5[%c0_13, %c0_14] : memref<36x128xbf16, #tpu.memory_space<vmem>>, vector<34x128xbf16>
    %c1_15 = arith.constant 1 : index
    %c0_16 = arith.constant 0 : index
    %13 = vector.load %arg5[%c1_15, %c0_16] : memref<36x128xbf16, #tpu.memory_space<vmem>>, vector<34x128xbf16>
    %c2 = arith.constant 2 : index
    %c0_17 = arith.constant 0 : index
    %14 = vector.load %arg5[%c2, %c0_17] : memref<36x128xbf16, #tpu.memory_space<vmem>>, vector<34x128xbf16>
    %15 = tpu.concatenate %12, %13, %14 in 1 : vector<34x128xbf16>, vector<34x128xbf16>, vector<34x128xbf16> -> vector<34x384xbf16>
    %c0_18 = arith.constant 0 : index
    %c0_19 = arith.constant 0 : index
    %16 = vector.load %arg2[%c0_18, %c0_19] : memref<384x128xbf16, #tpu.memory_space<vmem>>, vector<384x128xbf16>
    %cst_20 = arith.constant dense<0.000000e+00> : vector<34x128xf32>
    %17 = tpu.matmul %15, %16, %cst_20 {dimension_numbers = #tpu.dot_dimension_numbers<[1], [0], [0], [1], [0, 0, 1, 1], [], []>} : vector<34x384xbf16>, vector<384x128xbf16>, vector<34x128xf32> -> vector<34x128xf32>
    %c0_21 = arith.constant 0 : index
    %c0_22 = arith.constant 0 : index
    %18 = vector.load %arg6[%c0_21, %c0_22] : memref<36x128xbf16, #tpu.memory_space<vmem>>, vector<1x128xbf16>
    tpu.vector_store %arg6[%c0_21, %c0_22], %1 {strides = array<i32>} : memref<36x128xbf16, #tpu.memory_space<vmem>>, vector<1x128xbf16>,
    %cst_23 = arith.constant 0.000000e+00 : f32
    %19 = vector.broadcast %cst_23 : f32 to vector<34x128xf32>
    %20 = arith.maximumf %17, %19 : vector<34x128xf32>
    %21 = arith.truncf %20 : vector<34x128xf32> to vector<34x128xbf16>
    %c1_24 = arith.constant 1 : index
    %c0_25 = arith.constant 0 : index
    %22 = vector.load %arg6[%c1_24, %c0_25] : memref<36x128xbf16, #tpu.memory_space<vmem>>, vector<34x128xbf16>
    tpu.vector_store %arg6[%c1_24, %c0_25], %21 {strides = array<i32>} : memref<36x128xbf16, #tpu.memory_space<vmem>>, vector<34x128xbf16>,
    %c35_26 = arith.constant 35 : index
    %c0_27 = arith.constant 0 : index
    %23 = vector.load %arg6[%c35_26, %c0_27] : memref<36x128xbf16, #tpu.memory_space<vmem>>, vector<1x128xbf16>
    tpu.vector_store %arg6[%c35_26, %c0_27], %1 {strides = array<i32>} : memref<36x128xbf16, #tpu.memory_space<vmem>>, vector<1x128xbf16>,
    %cst_28 = arith.constant 0.000000e+00 : bf16
    %24 = vector.broadcast %cst_28 : bf16 to vector<2x128xbf16>
    %c17_29 = arith.constant 17 : index
    %c0_30 = arith.constant 0 : index
    %25 = vector.load %arg6[%c17_29, %c0_30] : memref<36x128xbf16, #tpu.memory_space<vmem>>, vector<2x128xbf16>
    tpu.vector_store %arg6[%c17_29, %c0_30], %24 {strides = array<i32>} : memref<36x128xbf16, #tpu.memory_space<vmem>>, vector<2x128xbf16>,
    %c0_31 = arith.constant 0 : index
    %c0_32 = arith.constant 0 : index
    %26 = vector.load %arg6[%c0_31, %c0_32] : memref<36x128xbf16, #tpu.memory_space<vmem>>, vector<34x128xbf16>
    %c1_33 = arith.constant 1 : index
    %c0_34 = arith.constant 0 : index
    %27 = vector.load %arg6[%c1_33, %c0_34] : memref<36x128xbf16, #tpu.memory_space<vmem>>, vector<34x128xbf16>
    %c2_35 = arith.constant 2 : index
    %c0_36 = arith.constant 0 : index
    %28 = vector.load %arg6[%c2_35, %c0_36] : memref<36x128xbf16, #tpu.memory_space<vmem>>, vector<34x128xbf16>
    %29 = tpu.concatenate %26, %27, %28 in 1 : vector<34x128xbf16>, vector<34x128xbf16>, vector<34x128xbf16> -> vector<34x384xbf16>
    %c0_37 = arith.constant 0 : index
    %c0_38 = arith.constant 0 : index
    %30 = vector.load %arg3[%c0_37, %c0_38] : memref<384x128xbf16, #tpu.memory_space<vmem>>, vector<384x128xbf16>
    %cst_39 = arith.constant dense<0.000000e+00> : vector<34x128xf32>
    %31 = tpu.matmul %29, %30, %cst_39 {dimension_numbers = #tpu.dot_dimension_numbers<[1], [0], [0], [1], [0, 0, 1, 1], [], []>} : vector<34x384xbf16>, vector<384x128xbf16>, vector<34x128xf32> -> vector<34x128xf32>
    %32 = vector.extract_strided_slice %31 {offsets = [0, 0], sizes = [16, 128], strides = [1, 1]} : vector<34x128xf32> to vector<16x128xf32>
    %c0_40 = arith.constant 0 : index
    %c0_41 = arith.constant 0 : index
    %c0_42 = arith.constant 0 : index
    %33 = vector.load %arg1[%c0_40, %c0_41, %c0_42] : memref<2x16x128xbf16, #tpu.memory_space<vmem>>, vector<1x16x128xbf16>
    %34 = vector.shape_cast %33 : vector<1x16x128xbf16> to vector<16x128xbf16>
    %35 = arith.extf %34 : vector<16x128xbf16> to vector<16x128xf32>
    %36 = arith.addf %32, %35 : vector<16x128xf32>
    %cst_43 = arith.constant 0.000000e+00 : f32
    %37 = vector.broadcast %cst_43 : f32 to vector<16x128xf32>
    %38 = arith.maximumf %36, %37 : vector<16x128xf32>
    %c0_44 = arith.constant 0 : index
    %c0_45 = arith.constant 0 : index
    %c0_46 = arith.constant 0 : index
    %39 = vector.load %arg4[%c0_44, %c0_45, %c0_46] : memref<2x16x128xf32, #tpu.memory_space<vmem>>, vector<1x16x128xf32>
    %40 = vector.shape_cast %39 : vector<1x16x128xf32> to vector<16x128xf32>
    %41 = vector.shape_cast %38 : vector<16x128xf32> to vector<1x16x128xf32>
    tpu.vector_store %arg4[%c0_44, %c0_45, %c0_46], %41 {strides = array<i32>} : memref<2x16x128xf32, #tpu.memory_space<vmem>>, vector<1x16x128xf32>,
    %42 = vector.extract_strided_slice %31 {offsets = [18, 0], sizes = [16, 128], strides = [1, 1]} : vector<34x128xf32> to vector<16x128xf32>
    %c1_47 = arith.constant 1 : index
    %c0_48 = arith.constant 0 : index
    %c0_49 = arith.constant 0 : index
    %43 = vector.load %arg1[%c1_47, %c0_48, %c0_49] : memref<2x16x128xbf16, #tpu.memory_space<vmem>>, vector<1x16x128xbf16>
    %44 = vector.shape_cast %43 : vector<1x16x128xbf16> to vector<16x128xbf16>
    %45 = arith.extf %44 : vector<16x128xbf16> to vector<16x128xf32>
    %46 = arith.addf %42, %45 : vector<16x128xf32>
    %cst_50 = arith.constant 0.000000e+00 : f32
    %47 = vector.broadcast %cst_50 : f32 to vector<16x128xf32>
    %48 = arith.maximumf %46, %47 : vector<16x128xf32>
    %c1_51 = arith.constant 1 : index
    %c0_52 = arith.constant 0 : index
    %c0_53 = arith.constant 0 : index
    %49 = vector.load %arg4[%c1_51, %c0_52, %c0_53] : memref<2x16x128xf32, #tpu.memory_space<vmem>>, vector<1x16x128xf32>
    %50 = vector.shape_cast %49 : vector<1x16x128xf32> to vector<16x128xf32>
    %51 = vector.shape_cast %48 : vector<16x128xf32> to vector<1x16x128xf32>
    tpu.vector_store %arg4[%c1_51, %c0_52, %c0_53], %51 {strides = array<i32>} : memref<2x16x128xf32, #tpu.memory_space<vmem>>, vector<1x16x128xf32>,
    return
  }
  func.func @transform_0(%arg0: i32) -> (i32, i32, i32) {
    %c0_i32 = arith.constant 0 : i32
    %c0_i32_0 = arith.constant 0 : i32
    %c0_i32_1 = arith.constant 0 : i32
    return %arg0, %c0_i32, %c0_i32_0 : i32, i32, i32
  }
  func.func @transform_1(%arg0: i32) -> (i32, i32) {
    %c0_i32 = arith.constant 0 : i32
    %c0_i32_0 = arith.constant 0 : i32
    %c0_i32_1 = arith.constant 0 : i32
    return %c0_i32, %c0_i32_0 : i32, i32
  }
  func.func @transform_2(%arg0: i32) -> (i32, i32) {
    %c0_i32 = arith.constant 0 : i32
    %c0_i32_0 = arith.constant 0 : i32
    %c0_i32_1 = arith.constant 0 : i32
    return %c0_i32, %c0_i32_0 : i32, i32
  }
  func.func @transform_3(%arg0: i32) -> (i32, i32, i32) {
    %c0_i32 = arith.constant 0 : i32
    %c0_i32_0 = arith.constant 0 : i32
    %c0_i32_1 = arith.constant 0 : i32
    return %arg0, %c0_i32, %c0_i32_0 : i32, i32, i32
  }
}

</mosaic_0001>

<llo_original>
// kernel: tpu_custom_call.1
$region0: #{tpu_custom_call.1}
  #allocation0 [shape = 'u32[]', space=smem, size = 0x4, offset = 0x4, fixed_abs, tag = 'smem constant byte address 0x4 - core index']
  #allocation1 [shape = 'u32[72,128]{1,0:T(1,128)}', space=vmem, size = 0x9000, scoped, tag = 'internal scratch']
  #allocation2 [shape = 'bf16[36,128]{1,0:T(8,128)(2,1)}', space=vmem, size = 0x2800, scoped, tag = 'scratch operand']
  #allocation3 [shape = 'bf16[36,128]{1,0:T(8,128)(2,1)}', space=vmem, size = 0x2800, scoped, tag = 'scratch operand']
  %s0 = inlined_call_operand.hbm [shape: bf16[2,16,128], index: 0, kind: input, shape index: {}]
  %s1 = inlined_call_operand.hbm [shape: bf16[384,128], index: 1, kind: input, shape index: {}]
  %s2 = inlined_call_operand.hbm [shape: bf16[384,128], index: 2, kind: input, shape index: {}]
  %s3 = inlined_call_operand.hbm [shape: f32[2,16,128], index: 3, kind: output, shape index: {}]
  %s4 = sld [smem:[#allocation0]]
  $region34: #{tpu_custom_call.1} parent=0
    _
  %s6 = ssub.s32 1, %s4
  %s7 = scalar_select 0, %s6, %s4
  $region1: #{tpu_custom_call.1} parent=0
    #allocation4 [shape = 'u8[8192]{0}', space=vmem, size = 0x2000, scoped, tag = 'input window, operand 0, single buffered']
    #allocation5 [shape = 's32[1]{0}', space=sflag, size = 0x4, scoped, tag = 'scoped memory for tpu_custom_call.1']
    #allocation6 [shape = 's32[1]{0}', space=sflag, size = 0x4, scoped, tag = 'scoped memory for tpu_custom_call.1']
    #allocation7 [shape = 'u8[98304]{0}', space=vmem, size = 0x18000, scoped, tag = 'input window, operand 1, single buffered']
    #allocation8 [shape = 's32[1]{0}', space=sflag, size = 0x4, scoped, tag = 'scoped memory for tpu_custom_call.1']
    #allocation9 [shape = 'u8[98304]{0}', space=vmem, size = 0x18000, scoped, tag = 'input window, operand 2, single buffered']
    #allocation10 [shape = 'u8[16384]{0}', space=vmem, size = 0x4000, scoped, tag = 'output window, operand 0, single buffered']
    %8 = vsyncpa [#allocation5], 0
    %9 = vsyncpa [#allocation8], 0
    %10 = vsyncpa [#allocation6], 0
    // Predicated region
    $region2: #{tpu_custom_call.1} parent=1 // pred_check
      _
    $region3: #{tpu_custom_call.1} parent=1 // pred_check_branch
      %12 = sbr.rel (0) target = $region5
    $region4: #{tpu_custom_call.1} parent=1 // pred_region
      %14 = vsyncadd [#allocation5], 0
      %s15 = sshll.u32 %s0, 4
      %s16 = int_to_ptr.hbm [resolvable:$true] %s15
      %s17 = sshll.u32 [#allocation4], 4
      %s18 = int_to_ptr.vmem [resolvable:$true] %s17
      %23 = dma.hbm_to_vmem [thread:$0]  %s16, 256, %s18, [#allocation5], 64, 64, 4
    $region5: #{tpu_custom_call.1} parent=1 // pred_fallthru
      _
    // Predicated region
    $region6: #{tpu_custom_call.1} parent=1 // pred_check
      _
    $region7: #{tpu_custom_call.1} parent=1 // pred_check_branch
      %25 = sbr.rel (0) target = $region9
    $region8: #{tpu_custom_call.1} parent=1 // pred_region
      %27 = vsyncadd [#allocation8], 0
      %s28 = sshll.u32 %s1, 4
      %s29 = int_to_ptr.hbm [resolvable:$true] %s28
      %s30 = sshll.u32 [#allocation7], 4
      %s31 = int_to_ptr.vmem [resolvable:$true] %s30
      %36 = dma.hbm_to_vmem [thread:$0]  %s29, 3072, %s31, [#allocation8], 64, 64, 4
    $region9: #{tpu_custom_call.1} parent=1 // pred_fallthru
      _
    // Predicated region
    $region10: #{tpu_custom_call.1} parent=1 // pred_check
      _
    $region11: #{tpu_custom_call.1} parent=1 // pred_check_branch
      %38 = sbr.rel (0) target = $region13
    $region12: #{tpu_custom_call.1} parent=1 // pred_region
      %40 = vsyncadd [#allocation8], 0
      %s41 = sshll.u32 %s2, 4
      %s42 = int_to_ptr.hbm [resolvable:$true] %s41
      %s43 = sshll.u32 [#allocation9], 4
      %s44 = int_to_ptr.vmem [resolvable:$true] %s43
      %49 = dma.hbm_to_vmem [thread:$0]  %s42, 3072, %s44, [#allocation8], 64, 64, 4
    $region13: #{tpu_custom_call.1} parent=1 // pred_fallthru
      _
    // Predicated region
    $region14: #{tpu_custom_call.1} parent=1 // pred_check
      _
    $region15: #{tpu_custom_call.1} parent=1 // pred_check_branch
      %51 = sbr.rel (0) target = $region17
    $region16: #{tpu_custom_call.1} parent=1 // pred_region
      %53 = dma.done [#allocation5], 256
    $region17: #{tpu_custom_call.1} parent=1 // pred_fallthru
      _
    // Predicated region
    $region18: #{tpu_custom_call.1} parent=1 // pred_check
      _
    $region19: #{tpu_custom_call.1} parent=1 // pred_check_branch
      %55 = sbr.rel (0) target = $region21
    $region20: #{tpu_custom_call.1} parent=1 // pred_region
      %57 = dma.done [#allocation8], 3072
    $region21: #{tpu_custom_call.1} parent=1 // pred_fallthru
      _
    // Predicated region
    $region22: #{tpu_custom_call.1} parent=1 // pred_check
      _
    $region23: #{tpu_custom_call.1} parent=1 // pred_check_branch
      %59 = sbr.rel (0) target = $region25
    $region24: #{tpu_custom_call.1} parent=1 // pred_region
      %61 = dma.done [#allocation8], 3072
    $region25: #{tpu_custom_call.1} parent=1 // pred_fallthru
      _
    %vm63 = vcmask 1040384
    %vm64 = vsmask.f32 256
    %vm65 = vmand %vm63, %vm64
    %v66 = vld [vmem:[#allocation2] sm:$0x1]
    %v67 = vsel %vm65, 0, %v66
    %68 = vst [vmem:[#allocation2] sm:$0x1] %v67
    %v69 = vld [vmem:[#allocation4] sm:$0xf]
    %v70 = vld [vmem:[#allocation4 + $0x4] sm:$0xf]
    %vm71 = vsmask.f32 4368
    %vm72 = vmor %vm64, %vm71
    %v74 = vshrl.u32 %v69, 16
    %v76 = vrot.slane %v74, 7
    %v77 = vshll.u32 %v69, 16
    %v79 = vor.u32 %v76, %v77
    %v80 = vrot.slane %v76, 4
    %v82 = vshrl.u32 %v70, 16
    %v84 = vrot.slane %v82, 7
    %v85 = vshll.u32 %v70, 16
    %v87 = vor.u32 %v84, %v85
    %v88 = vsel %vm72, %v80, %v87
    %v89 = vrot.slane %v84, 4
    %vm93 = vcmask 1043456
    %vm94 = vsmask.f32 7938
    %vm95 = vmand %vm93, %vm94
    %v96 = vld [vmem:[#allocation2] sm:$0xf]
    %v97 = vsel %vm95, %v79, %v96
    %98 = vst [vmem:[#allocation2] sm:$0xf] %v97
    %99 = vst [vmem:[#allocation2 + $0x4] sm:$0xf] %v88
    %v100 = vld [vmem:[#allocation2 + $0x8] sm:$0x1]
    %v101 = vsel %vm65, %v89, %v100
    %102 = vst [vmem:[#allocation2 + $0x8] sm:$0x1] %v101
    %vm103 = vmand %vm63, %vm94
    %v104 = vld [vmem:[#allocation2 + $0x8] sm:$0x1]
    %v105 = vsel %vm103, 0, %v104
    %106 = vst [vmem:[#allocation2 + $0x8] sm:$0x1] %v105
    %vm107 = vcmask 1041409
    %vm108 = vsmask.f32 1280
    %vm109 = vmand %vm107, %vm108
    %v110 = vld [vmem:[#allocation2 + $0x8] sm:$0x2]
    %v111 = vsel %vm109, 0, %v110
    %112 = vst [vmem:[#allocation2 + $0x8] sm:$0x2] %v111
    %s113 = scalar_lea.vmem [#allocation4], 8
    %v114 = vld [vmem:[%s113] sm:$0xf]
    %v115 = vld [vmem:[%s113 + $0x4] sm:$0xf]
    %vm116 = vsmask.f32 5392
    %vm117 = vmor %vm108, %vm116
    %v119 = vshrl.u32 %v114, 16
    %v121 = vrot.slane %v119, 6
    %v122 = vshll.u32 %v114, 16
    %v124 = vrot.slane %v122, 7
    %v125 = vor.u32 %v121, %v124
    %v126 = vrot.slane %v125, 4
    %v128 = vshrl.u32 %v115, 16
    %v130 = vrot.slane %v128, 6
    %v131 = vshll.u32 %v115, 16
    %v133 = vrot.slane %v131, 7
    %v134 = vor.u32 %v130, %v133
    %v135 = vsel %vm117, %v126, %v134
    %v136 = vrot.slane %v134, 4
    %vm140 = vcmask 1043457
    %vm141 = vsmask.f32 7942
    %vm142 = vmand %vm140, %vm141
    %v143 = vld [vmem:[#allocation2 + $0x8] sm:$0xe]
    %v144 = vsel %vm142, %v125, %v143
    %145 = vst [vmem:[#allocation2 + $0x8] sm:$0xe] %v144
    %146 = vst [vmem:[#allocation2 + $0xc] sm:$0xf] %v135
    %vm147 = vcmask 1041408
    %vm148 = vmand %vm147, %vm108
    %v149 = vld [vmem:[#allocation2 + $0x10] sm:$0x3]
    %v150 = vsel %vm148, %v136, %v149
    %151 = vst [vmem:[#allocation2 + $0x10] sm:$0x3] %v150
    %vm152 = vmand %vm107, %vm141
    %v153 = vld [vmem:[#allocation2 + $0x10] sm:$0x2]
    %v154 = vsel %vm152, 0, %v153
    %155 = vst [vmem:[#allocation2 + $0x10] sm:$0x2] %v154
    %v156 = vld [vmem:[#allocation2] sm:$0xf]
    %v157 = vld [vmem:[#allocation2 + $0x4] sm:$0xf]
    %v158 = vld [vmem:[#allocation2 + $0x8] sm:$0xf]
    %v159 = vld [vmem:[#allocation2 + $0xc] sm:$0xf]
    %v160 = vld [vmem:[#allocation2 + $0x10] sm:$0x1]
    %v161 = vld [vmem:[#allocation2 + $0x10] sm:$0x3]
    %v162 = vld [vmem:[#allocation2] sm:$0xe]
    %v168 = vunpack.c.l.b16 %v156
    %v169 = vunpack.c.l.b16 %v157
    %v170 = vunpack.c.l.b16 %v158
    %v171 = vunpack.c.l.b16 %v159
    %v172 = vunpack.c.l.b16 %v160
    %v173 = vpack.c.b16 %v169, %v168
    %v174 = vpack.c.b16 %v171, %v170
    %v175 = vpack.c.b16 %v172, %v172
    %v180 = vunpack.c.l.b16 %v161
    %v181 = vpack.c.b16 %v180, %v180
    %vm182 = vsmask.f32 7424
    %v184 = vshrl.u32 %v173, 16
    %v186 = vshll.u32 %v173, 16
    %v188 = vrot.slane %v186, 1
    %v189 = vor.u32 %v184, %v188
    %v191 = vshll.u32 %v174, 16
    %v193 = vrot.slane %v191, 1
    %v194 = vsel %vm182, %v189, %v193
    %v195 = vshrl.u32 %v174, 16
    %v197 = vor.u32 %v195, %v193
    %v199 = vshll.u32 %v181, 16
    %v201 = vrot.slane %v199, 1
    %v202 = vsel %vm182, %v197, %v201
    %v203 = vshrl.u32 %v181, 16
    %v205 = vor.u32 %v203, %v201
    %v210 = vunpack.c.l.b16 %v162
    %v211 = vpack.c.b16 %v169, %v210
    %vm212 = vcmask 1046528
    %v213 = vrot.slane %v211, 1
    %v214 = vrot.slane %v174, 1
    %v215 = vsel %vm212, %v213, %v214
    %v216 = vrot.slane %v181, 1
    %v217 = vsel %vm212, %v214, %v216
    %v221 = vld [vmem:[#allocation7] sm:$0xf]
    %v222 = vld [vmem:[#allocation7 + $0x4] sm:$0xf]
    %v223 = vld [vmem:[#allocation7 + $0x8] sm:$0xf]
    %v224 = vld [vmem:[#allocation7 + $0xc] sm:$0xf]
    %v225 = vld [vmem:[#allocation7 + $0x10] sm:$0xf]
    %v226 = vld [vmem:[#allocation7 + $0x14] sm:$0xf]
    %v227 = vld [vmem:[#allocation7 + $0x18] sm:$0xf]
    %v228 = vld [vmem:[#allocation7 + $0x1c] sm:$0xf]
    %v229 = vld [vmem:[#allocation7 + $0x20] sm:$0xf]
    %v230 = vld [vmem:[#allocation7 + $0x24] sm:$0xf]
    %v231 = vld [vmem:[#allocation7 + $0x28] sm:$0xf]
    %v232 = vld [vmem:[#allocation7 + $0x2c] sm:$0xf]
    %v233 = vld [vmem:[#allocation7 + $0x30] sm:$0xf]
    %v234 = vld [vmem:[#allocation7 + $0x34] sm:$0xf]
    %v235 = vld [vmem:[#allocation7 + $0x38] sm:$0xf]
    %v236 = vld [vmem:[#allocation7 + $0x3c] sm:$0xf]
    %v237 = vld [vmem:[#allocation7 + $0x40] sm:$0xf]
    %v238 = vld [vmem:[#allocation7 + $0x44] sm:$0xf]
    %v239 = vld [vmem:[#allocation7 + $0x48] sm:$0xf]
    %v240 = vld [vmem:[#allocation7 + $0x4c] sm:$0xf]
    %v241 = vld [vmem:[#allocation7 + $0x50] sm:$0xf]
    %v242 = vld [vmem:[#allocation7 + $0x54] sm:$0xf]
    %v243 = vld [vmem:[#allocation7 + $0x58] sm:$0xf]
    %v244 = vld [vmem:[#allocation7 + $0x5c] sm:$0xf]
    %v245 = vld [vmem:[#allocation7 + $0x60] sm:$0xf]
    %v246 = vld [vmem:[#allocation7 + $0x64] sm:$0xf]
    %v247 = vld [vmem:[#allocation7 + $0x68] sm:$0xf]
    %v248 = vld [vmem:[#allocation7 + $0x6c] sm:$0xf]
    %v249 = vld [vmem:[#allocation7 + $0x70] sm:$0xf]
    %v250 = vld [vmem:[#allocation7 + $0x74] sm:$0xf]
    %v251 = vld [vmem:[#allocation7 + $0x78] sm:$0xf]
    %v252 = vld [vmem:[#allocation7 + $0x7c] sm:$0xf]
    %v253 = vld [vmem:[#allocation7 + $0x80] sm:$0xf]
    %v254 = vld [vmem:[#allocation7 + $0x84] sm:$0xf]
    %v255 = vld [vmem:[#allocation7 + $0x88] sm:$0xf]
    %v256 = vld [vmem:[#allocation7 + $0x8c] sm:$0xf]
    %v257 = vld [vmem:[#allocation7 + $0x90] sm:$0xf]
    %v258 = vld [vmem:[#allocation7 + $0x94] sm:$0xf]
    %v259 = vld [vmem:[#allocation7 + $0x98] sm:$0xf]
    %v260 = vld [vmem:[#allocation7 + $0x9c] sm:$0xf]
    %v261 = vld [vmem:[#allocation7 + $0xa0] sm:$0xf]
    %v262 = vld [vmem:[#allocation7 + $0xa4] sm:$0xf]
    %v263 = vld [vmem:[#allocation7 + $0xa8] sm:$0xf]
    %v264 = vld [vmem:[#allocation7 + $0xac] sm:$0xf]
    %v265 = vld [vmem:[#allocation7 + $0xb0] sm:$0xf]
    %v266 = vld [vmem:[#allocation7 + $0xb4] sm:$0xf]
    %v267 = vld [vmem:[#allocation7 + $0xb8] sm:$0xf]
    %v268 = vld [vmem:[#allocation7 + $0xbc] sm:$0xf]
    %v317 = vunpack.c.l.b16 %v221
    %v318 = vunpack.c.l.b16 %v222
    %v319 = vunpack.c.l.b16 %v223
    %v320 = vunpack.c.l.b16 %v224
    %v321 = vunpack.c.l.b16 %v225
    %v322 = vunpack.c.l.b16 %v226
    %v323 = vunpack.c.l.b16 %v227
    %v324 = vunpack.c.l.b16 %v228
    %v325 = vunpack.c.l.b16 %v229
    %v326 = vunpack.c.l.b16 %v230
    %v327 = vunpack.c.l.b16 %v231
    %v328 = vunpack.c.l.b16 %v232
    %v329 = vunpack.c.l.b16 %v233
    %v330 = vunpack.c.l.b16 %v234
    %v331 = vunpack.c.l.b16 %v235
    %v332 = vunpack.c.l.b16 %v236
    %v333 = vunpack.c.l.b16 %v237
    %v334 = vunpack.c.l.b16 %v238
    %v335 = vunpack.c.l.b16 %v239
    %v336 = vunpack.c.l.b16 %v240
    %v337 = vunpack.c.l.b16 %v241
    %v338 = vunpack.c.l.b16 %v242
    %v339 = vunpack.c.l.b16 %v243
    %v340 = vunpack.c.l.b16 %v244
    %v341 = vunpack.c.l.b16 %v245
    %v342 = vunpack.c.l.b16 %v246
    %v343 = vunpack.c.l.b16 %v247
    %v344 = vunpack.c.l.b16 %v248
    %v345 = vunpack.c.l.b16 %v249
    %v346 = vunpack.c.l.b16 %v250
    %v347 = vunpack.c.l.b16 %v251
    %v348 = vunpack.c.l.b16 %v252
    %v349 = vunpack.c.l.b16 %v253
    %v350 = vunpack.c.l.b16 %v254
    %v351 = vunpack.c.l.b16 %v255
    %v352 = vunpack.c.l.b16 %v256
    %v353 = vunpack.c.l.b16 %v257
    %v354 = vunpack.c.l.b16 %v258
    %v355 = vunpack.c.l.b16 %v259
    %v356 = vunpack.c.l.b16 %v260
    %v357 = vunpack.c.l.b16 %v261
    %v358 = vunpack.c.l.b16 %v262
    %v359 = vunpack.c.l.b16 %v263
    %v360 = vunpack.c.l.b16 %v264
    %v361 = vunpack.c.l.b16 %v265
    %v362 = vunpack.c.l.b16 %v266
    %v363 = vunpack.c.l.b16 %v267
    %v364 = vunpack.c.l.b16 %v268
    %v365 = vpack.c.b16 %v318, %v317
    %v366 = vpack.c.b16 %v320, %v319
    %v367 = vpack.c.b16 %v322, %v321
    %v368 = vpack.c.b16 %v324, %v323
    %v369 = vpack.c.b16 %v326, %v325
    %v370 = vpack.c.b16 %v328, %v327
    %v371 = vpack.c.b16 %v330, %v329
    %v372 = vpack.c.b16 %v332, %v331
    %v373 = vpack.c.b16 %v334, %v333
    %v374 = vpack.c.b16 %v336, %v335
    %v375 = vpack.c.b16 %v338, %v337
    %v376 = vpack.c.b16 %v340, %v339
    %v377 = vpack.c.b16 %v342, %v341
    %v378 = vpack.c.b16 %v344, %v343
    %v379 = vpack.c.b16 %v346, %v345
    %v380 = vpack.c.b16 %v348, %v347
    %v381 = vpack.c.b16 %v350, %v349
    %v382 = vpack.c.b16 %v352, %v351
    %v383 = vpack.c.b16 %v354, %v353
    %v384 = vpack.c.b16 %v356, %v355
    %v385 = vpack.c.b16 %v358, %v357
    %v386 = vpack.c.b16 %v360, %v359
    %v387 = vpack.c.b16 %v362, %v361
    %v388 = vpack.c.b16 %v364, %v363
    %413 = vmatpush.bf16.msra.mxu0 %v372
    %414 = vmatpush.bf16.msra.mxu0 %v371
    %415 = vmatpush.bf16.msra.mxu0 %v370
    %416 = vmatpush.bf16.msra.mxu0 %v369
    %417 = vmatpush.bf16.msra.mxu0 %v368
    %418 = vmatpush.bf16.msra.mxu0 %v367
    %419 = vmatpush.bf16.msra.mxu0 %v366
    %420 = vmatpush.bf16.msra.mxu0 %v365
    %421 = vmatmul.bf16.gmra.mxu0 %v173
    %v422 = vpop.f32.mrf.mxu0
    %v423 = vadd.f32 0.0, %v422
    %v424 = vpop.f32.mrf.mxu0
    %v425 = vadd.f32 0.0, %v424
    %426 = vmatmul.bf16.gmra.mxu0 %v174
    %v427 = vpop.f32.mrf.mxu0
    %v428 = vadd.f32 0.0, %v427
    %v429 = vpop.f32.mrf.mxu0
    %v430 = vadd.f32 0.0, %v429
    %431 = vmatmul.bf16.gmra.mxu0 %v175
    %v432 = vpop.f32.mrf.mxu0
    %v433 = vadd.f32 0.0, %v432
    %v434 = vpop.f32.mrf.mxu0
    %435 = vdwg.mxu0
    %436 = vmatpush.bf16.msra.mxu0 %v380
    %437 = vmatpush.bf16.msra.mxu0 %v379
    %438 = vmatpush.bf16.msra.mxu0 %v378
    %439 = vmatpush.bf16.msra.mxu0 %v377
    %440 = vmatpush.bf16.msra.mxu0 %v376
    %441 = vmatpush.bf16.msra.mxu0 %v375
    %442 = vmatpush.bf16.msra.mxu0 %v374
    %443 = vmatpush.bf16.msra.mxu0 %v373
    %444 = vmatmul.bf16.gmra.mxu0 %v194
    %v445 = vpop.f32.mrf.mxu0
    %v446 = vadd.f32 %v423, %v445
    %v447 = vpop.f32.mrf.mxu0
    %v448 = vadd.f32 %v425, %v447
    %449 = vmatmul.bf16.gmra.mxu0 %v202
    %v450 = vpop.f32.mrf.mxu0
    %v451 = vadd.f32 %v428, %v450
    %v452 = vpop.f32.mrf.mxu0
    %v453 = vadd.f32 %v430, %v452
    %454 = vmatmul.bf16.gmra.mxu0 %v205
    %v455 = vpop.f32.mrf.mxu0
    %v456 = vadd.f32 %v433, %v455
    %v457 = vpop.f32.mrf.mxu0
    %458 = vdwg.mxu0
    %459 = vmatpush.bf16.msra.mxu0 %v388
    %460 = vmatpush.bf16.msra.mxu0 %v387
    %461 = vmatpush.bf16.msra.mxu0 %v386
    %462 = vmatpush.bf16.msra.mxu0 %v385
    %463 = vmatpush.bf16.msra.mxu0 %v384
    %464 = vmatpush.bf16.msra.mxu0 %v383
    %465 = vmatpush.bf16.msra.mxu0 %v382
    %466 = vmatpush.bf16.msra.mxu0 %v381
    %467 = vmatmul.bf16.gmra.mxu0 %v215
    %v468 = vpop.f32.mrf.mxu0
    %v469 = vadd.f32 %v446, %v468
    %v470 = vpop.f32.mrf.mxu0
    %v471 = vadd.f32 %v448, %v470
    %472 = vmatmul.bf16.gmra.mxu0 %v217
    %v473 = vpop.f32.mrf.mxu0
    %v474 = vadd.f32 %v451, %v473
    %v475 = vpop.f32.mrf.mxu0
    %v476 = vadd.f32 %v453, %v475
    %477 = vmatmul.bf16.gmra.mxu0 %v216
    %v478 = vpop.f32.mrf.mxu0
    %v479 = vadd.f32 %v456, %v478
    %v480 = vpop.f32.mrf.mxu0
    %481 = vdwg.mxu0
    %v482 = vld [vmem:[#allocation3] sm:$0x1]
    %v483 = vsel %vm65, 0, %v482
    %484 = vst [vmem:[#allocation3] sm:$0x1] %v483
    %v485 = vmax.f32 %v469, 0.0
    %v486 = vmax.f32 %v471, 0.0
    %v487 = vmax.f32 %v474, 0.0
    %v488 = vmax.f32 %v476, 0.0
    %v489 = vmax.f32 %v479, 0.0
    %v490 = vpack.c.bf16 %v485, %v485
    %v491 = vpack.c.bf16 %v486, %v486
    %v492 = vpack.c.bf16 %v487, %v487
    %v493 = vpack.c.bf16 %v488, %v488
    %v494 = vpack.c.bf16 %v489, %v489
    %v496 = vshrl.u32 %v490, 16
    %v498 = vrot.slane %v496, 7
    %v499 = vshll.u32 %v490, 16
    %v501 = vor.u32 %v498, %v499
    %v502 = vrot.slane %v498, 4
    %v504 = vshrl.u32 %v491, 16
    %v506 = vrot.slane %v504, 7
    %v507 = vshll.u32 %v491, 16
    %v509 = vor.u32 %v506, %v507
    %v510 = vsel %vm72, %v502, %v509
    %v511 = vrot.slane %v506, 4
    %v513 = vshrl.u32 %v492, 16
    %v515 = vrot.slane %v513, 7
    %v516 = vshll.u32 %v492, 16
    %v518 = vor.u32 %v515, %v516
    %v519 = vsel %vm72, %v511, %v518
    %v520 = vrot.slane %v515, 4
    %v522 = vshrl.u32 %v493, 16
    %v524 = vrot.slane %v522, 7
    %v525 = vshll.u32 %v493, 16
    %v527 = vor.u32 %v524, %v525
    %v528 = vsel %vm72, %v520, %v527
    %v529 = vrot.slane %v524, 4
    %v531 = vshrl.u32 %v494, 16
    %v533 = vrot.slane %v531, 7
    %v534 = vshll.u32 %v494, 16
    %v536 = vor.u32 %v533, %v534
    %v537 = vsel %vm72, %v529, %v536
    %v543 = vld [vmem:[#allocation3] sm:$0xf]
    %v544 = vsel %vm95, %v501, %v543
    %545 = vst [vmem:[#allocation3] sm:$0xf] %v544
    %546 = vst [vmem:[#allocation3 + $0x4] sm:$0xf] %v510
    %547 = vst [vmem:[#allocation3 + $0x8] sm:$0xf] %v519
    %548 = vst [vmem:[#allocation3 + $0xc] sm:$0xf] %v528
    %v549 = vld [vmem:[#allocation3 + $0x10] sm:$0x3]
    %v550 = vsel %vm148, %v537, %v549
    %551 = vst [vmem:[#allocation3 + $0x10] sm:$0x3] %v550
    %v552 = vld [vmem:[#allocation3 + $0x10] sm:$0x2]
    %v553 = vsel %vm152, 0, %v552
    %554 = vst [vmem:[#allocation3 + $0x10] sm:$0x2] %v553
    %vm555 = vsmask.f32 1282
    %vm556 = vmand %vm147, %vm555
    %v557 = vld [vmem:[#allocation3 + $0x8] sm:$0x3]
    %v558 = vsel %vm556, 0, %v557
    %559 = vst [vmem:[#allocation3 + $0x8] sm:$0x3] %v558
    %v560 = vld [vmem:[#allocation3] sm:$0xf]
    %v561 = vld [vmem:[#allocation3 + $0x4] sm:$0xf]
    %v562 = vld [vmem:[#allocation3 + $0x8] sm:$0xf]
    %v563 = vld [vmem:[#allocation3 + $0xc] sm:$0xf]
    %v564 = vld [vmem:[#allocation3 + $0x10] sm:$0x1]
    %v565 = vld [vmem:[#allocation3 + $0x10] sm:$0x3]
    %v566 = vld [vmem:[#allocation3] sm:$0xe]
    %v572 = vunpack.c.l.b16 %v560
    %v573 = vunpack.c.l.b16 %v561
    %v574 = vunpack.c.l.b16 %v562
    %v575 = vunpack.c.l.b16 %v563
    %v576 = vunpack.c.l.b16 %v564
    %v577 = vpack.c.b16 %v573, %v572
    %v578 = vpack.c.b16 %v575, %v574
    %v579 = vpack.c.b16 %v576, %v576
    %v584 = vunpack.c.l.b16 %v565
    %v585 = vpack.c.b16 %v584, %v584
    %v587 = vshrl.u32 %v577, 16
    %v589 = vshll.u32 %v577, 16
    %v591 = vrot.slane %v589, 1
    %v592 = vor.u32 %v587, %v591
    %v594 = vshll.u32 %v578, 16
    %v596 = vrot.slane %v594, 1
    %v597 = vsel %vm182, %v592, %v596
    %v598 = vshrl.u32 %v578, 16
    %v600 = vor.u32 %v598, %v596
    %v602 = vshll.u32 %v585, 16
    %v604 = vrot.slane %v602, 1
    %v605 = vsel %vm182, %v600, %v604
    %v606 = vshrl.u32 %v585, 16
    %v608 = vor.u32 %v606, %v604
    %v613 = vunpack.c.l.b16 %v566
    %v614 = vpack.c.b16 %v573, %v613
    %v615 = vrot.slane %v614, 1
    %v616 = vrot.slane %v578, 1
    %v617 = vsel %vm212, %v615, %v616
    %v618 = vrot.slane %v585, 1
    %v619 = vsel %vm212, %v616, %v618
    %v623 = vld [vmem:[#allocation9] sm:$0xf]
    %v624 = vld [vmem:[#allocation9 + $0x4] sm:$0xf]
    %v625 = vld [vmem:[#allocation9 + $0x8] sm:$0xf]
    %v626 = vld [vmem:[#allocation9 + $0xc] sm:$0xf]
    %v627 = vld [vmem:[#allocation9 + $0x10] sm:$0xf]
    %v628 = vld [vmem:[#allocation9 + $0x14] sm:$0xf]
    %v629 = vld [vmem:[#allocation9 + $0x18] sm:$0xf]
    %v630 = vld [vmem:[#allocation9 + $0x1c] sm:$0xf]
    %v631 = vld [vmem:[#allocation9 + $0x20] sm:$0xf]
    %v632 = vld [vmem:[#allocation9 + $0x24] sm:$0xf]
    %v633 = vld [vmem:[#allocation9 + $0x28] sm:$0xf]
    %v634 = vld [vmem:[#allocation9 + $0x2c] sm:$0xf]
    %v635 = vld [vmem:[#allocation9 + $0x30] sm:$0xf]
    %v636 = vld [vmem:[#allocation9 + $0x34] sm:$0xf]
    %v637 = vld [vmem:[#allocation9 + $0x38] sm:$0xf]
    %v638 = vld [vmem:[#allocation9 + $0x3c] sm:$0xf]
    %v639 = vld [vmem:[#allocation9 + $0x40] sm:$0xf]
    %v640 = vld [vmem:[#allocation9 + $0x44] sm:$0xf]
    %v641 = vld [vmem:[#allocation9 + $0x48] sm:$0xf]
    %v642 = vld [vmem:[#allocation9 + $0x4c] sm:$0xf]
    %v643 = vld [vmem:[#allocation9 + $0x50] sm:$0xf]
    %v644 = vld [vmem:[#allocation9 + $0x54] sm:$0xf]
    %v645 = vld [vmem:[#allocation9 + $0x58] sm:$0xf]
    %v646 = vld [vmem:[#allocation9 + $0x5c] sm:$0xf]
    %v647 = vld [vmem:[#allocation9 + $0x60] sm:$0xf]
    %v648 = vld [vmem:[#allocation9 + $0x64] sm:$0xf]
    %v649 = vld [vmem:[#allocation9 + $0x68] sm:$0xf]
    %v650 = vld [vmem:[#allocation9 + $0x6c] sm:$0xf]
    %v651 = vld [vmem:[#allocation9 + $0x70] sm:$0xf]
    %v652 = vld [vmem:[#allocation9 + $0x74] sm:$0xf]
    %v653 = vld [vmem:[#allocation9 + $0x78] sm:$0xf]
    %v654 = vld [vmem:[#allocation9 + $0x7c] sm:$0xf]
    %v655 = vld [vmem:[#allocation9 + $0x80] sm:$0xf]
    %v656 = vld [vmem:[#allocation9 + $0x84] sm:$0xf]
    %v657 = vld [vmem:[#allocation9 + $0x88] sm:$0xf]
    %v658 = vld [vmem:[#allocation9 + $0x8c] sm:$0xf]
    %v659 = vld [vmem:[#allocation9 + $0x90] sm:$0xf]
    %v660 = vld [vmem:[#allocation9 + $0x94] sm:$0xf]
    %v661 = vld [vmem:[#allocation9 + $0x98] sm:$0xf]
    %v662 = vld [vmem:[#allocation9 + $0x9c] sm:$0xf]
    %v663 = vld [vmem:[#allocation9 + $0xa0] sm:$0xf]
    %v664 = vld [vmem:[#allocation9 + $0xa4] sm:$0xf]
    %v665 = vld [vmem:[#allocation9 + $0xa8] sm:$0xf]
    %v666 = vld [vmem:[#allocation9 + $0xac] sm:$0xf]
    %v667 = vld [vmem:[#allocation9 + $0xb0] sm:$0xf]
    %v668 = vld [vmem:[#allocation9 + $0xb4] sm:$0xf]
    %v669 = vld [vmem:[#allocation9 + $0xb8] sm:$0xf]
    %v670 = vld [vmem:[#allocation9 + $0xbc] sm:$0xf]
    %v719 = vunpack.c.l.b16 %v623
    %v720 = vunpack.c.l.b16 %v624
    %v721 = vunpack.c.l.b16 %v625
    %v722 = vunpack.c.l.b16 %v626
    %v723 = vunpack.c.l.b16 %v627
    %v724 = vunpack.c.l.b16 %v628
    %v725 = vunpack.c.l.b16 %v629
    %v726 = vunpack.c.l.b16 %v630
    %v727 = vunpack.c.l.b16 %v631
    %v728 = vunpack.c.l.b16 %v632
    %v729 = vunpack.c.l.b16 %v633
    %v730 = vunpack.c.l.b16 %v634
    %v731 = vunpack.c.l.b16 %v635
    %v732 = vunpack.c.l.b16 %v636
    %v733 = vunpack.c.l.b16 %v637
    %v734 = vunpack.c.l.b16 %v638
    %v735 = vunpack.c.l.b16 %v639
    %v736 = vunpack.c.l.b16 %v640
    %v737 = vunpack.c.l.b16 %v641
    %v738 = vunpack.c.l.b16 %v642
    %v739 = vunpack.c.l.b16 %v643
    %v740 = vunpack.c.l.b16 %v644
    %v741 = vunpack.c.l.b16 %v645
    %v742 = vunpack.c.l.b16 %v646
    %v743 = vunpack.c.l.b16 %v647
    %v744 = vunpack.c.l.b16 %v648
    %v745 = vunpack.c.l.b16 %v649
    %v746 = vunpack.c.l.b16 %v650
    %v747 = vunpack.c.l.b16 %v651
    %v748 = vunpack.c.l.b16 %v652
    %v749 = vunpack.c.l.b16 %v653
    %v750 = vunpack.c.l.b16 %v654
    %v751 = vunpack.c.l.b16 %v655
    %v752 = vunpack.c.l.b16 %v656
    %v753 = vunpack.c.l.b16 %v657
    %v754 = vunpack.c.l.b16 %v658
    %v755 = vunpack.c.l.b16 %v659
    %v756 = vunpack.c.l.b16 %v660
    %v757 = vunpack.c.l.b16 %v661
    %v758 = vunpack.c.l.b16 %v662
    %v759 = vunpack.c.l.b16 %v663
    %v760 = vunpack.c.l.b16 %v664
    %v761 = vunpack.c.l.b16 %v665
    %v762 = vunpack.c.l.b16 %v666
    %v763 = vunpack.c.l.b16 %v667
    %v764 = vunpack.c.l.b16 %v668
    %v765 = vunpack.c.l.b16 %v669
    %v766 = vunpack.c.l.b16 %v670
    %v767 = vpack.c.b16 %v720, %v719
    %v768 = vpack.c.b16 %v722, %v721
    %v769 = vpack.c.b16 %v724, %v723
    %v770 = vpack.c.b16 %v726, %v725
    %v771 = vpack.c.b16 %v728, %v727
    %v772 = vpack.c.b16 %v730, %v729
    %v773 = vpack.c.b16 %v732, %v731
    %v774 = vpack.c.b16 %v734, %v733
    %v775 = vpack.c.b16 %v736, %v735
    %v776 = vpack.c.b16 %v738, %v737
    %v777 = vpack.c.b16 %v740, %v739
    %v778 = vpack.c.b16 %v742, %v741
    %v779 = vpack.c.b16 %v744, %v743
    %v780 = vpack.c.b16 %v746, %v745
    %v781 = vpack.c.b16 %v748, %v747
    %v782 = vpack.c.b16 %v750, %v749
    %v783 = vpack.c.b16 %v752, %v751
    %v784 = vpack.c.b16 %v754, %v753
    %v785 = vpack.c.b16 %v756, %v755
    %v786 = vpack.c.b16 %v758, %v757
    %v787 = vpack.c.b16 %v760, %v759
    %v788 = vpack.c.b16 %v762, %v761
    %v789 = vpack.c.b16 %v764, %v763
    %v790 = vpack.c.b16 %v766, %v765
    %815 = vmatpush.bf16.msra.mxu0 %v774
    %816 = vmatpush.bf16.msra.mxu0 %v773
    %817 = vmatpush.bf16.msra.mxu0 %v772
    %818 = vmatpush.bf16.msra.mxu0 %v771
    %819 = vmatpush.bf16.msra.mxu0 %v770
    %820 = vmatpush.bf16.msra.mxu0 %v769
    %821 = vmatpush.bf16.msra.mxu0 %v768
    %822 = vmatpush.bf16.msra.mxu0 %v767
    %823 = vmatmul.bf16.gmra.mxu0 %v577
    %v824 = vpop.f32.mrf.mxu0
    %v825 = vadd.f32 0.0, %v824
    %v826 = vpop.f32.mrf.mxu0
    %v827 = vadd.f32 0.0, %v826
    %828 = vmatmul.bf16.gmra.mxu0 %v578
    %v829 = vpop.f32.mrf.mxu0
    %v830 = vadd.f32 0.0, %v829
    %v831 = vpop.f32.mrf.mxu0
    %v832 = vadd.f32 0.0, %v831
    %833 = vmatmul.bf16.gmra.mxu0 %v579
    %v834 = vpop.f32.mrf.mxu0
    %v835 = vadd.f32 0.0, %v834
    %v836 = vpop.f32.mrf.mxu0
    %837 = vdwg.mxu0
    %838 = vmatpush.bf16.msra.mxu0 %v782
    %839 = vmatpush.bf16.msra.mxu0 %v781
    %840 = vmatpush.bf16.msra.mxu0 %v780
    %841 = vmatpush.bf16.msra.mxu0 %v779
    %842 = vmatpush.bf16.msra.mxu0 %v778
    %843 = vmatpush.bf16.msra.mxu0 %v777
    %844 = vmatpush.bf16.msra.mxu0 %v776
    %845 = vmatpush.bf16.msra.mxu0 %v775
    %846 = vmatmul.bf16.gmra.mxu0 %v597
    %v847 = vpop.f32.mrf.mxu0
    %v848 = vadd.f32 %v825, %v847
    %v849 = vpop.f32.mrf.mxu0
    %v850 = vadd.f32 %v827, %v849
    %851 = vmatmul.bf16.gmra.mxu0 %v605
    %v852 = vpop.f32.mrf.mxu0
    %v853 = vadd.f32 %v830, %v852
    %v854 = vpop.f32.mrf.mxu0
    %v855 = vadd.f32 %v832, %v854
    %856 = vmatmul.bf16.gmra.mxu0 %v608
    %v857 = vpop.f32.mrf.mxu0
    %v858 = vadd.f32 %v835, %v857
    %v859 = vpop.f32.mrf.mxu0
    %860 = vdwg.mxu0
    %861 = vmatpush.bf16.msra.mxu0 %v790
    %862 = vmatpush.bf16.msra.mxu0 %v789
    %863 = vmatpush.bf16.msra.mxu0 %v788
    %864 = vmatpush.bf16.msra.mxu0 %v787
    %865 = vmatpush.bf16.msra.mxu0 %v786
    %866 = vmatpush.bf16.msra.mxu0 %v785
    %867 = vmatpush.bf16.msra.mxu0 %v784
    %868 = vmatpush.bf16.msra.mxu0 %v783
    %869 = vmatmul.bf16.gmra.mxu0 %v617
    %v870 = vpop.f32.mrf.mxu0
    %v871 = vadd.f32 %v848, %v870
    %v872 = vpop.f32.mrf.mxu0
    %v873 = vadd.f32 %v850, %v872
    %874 = vmatmul.bf16.gmra.mxu0 %v619
    %v875 = vpop.f32.mrf.mxu0
    %v876 = vadd.f32 %v853, %v875
    %v877 = vpop.f32.mrf.mxu0
    %v878 = vadd.f32 %v855, %v877
    %879 = vmatmul.bf16.gmra.mxu0 %v618
    %v880 = vpop.f32.mrf.mxu0
    %v881 = vadd.f32 %v858, %v880
    %v882 = vpop.f32.mrf.mxu0
    %883 = vdwg.mxu0
    %v884 = vld [vmem:[#allocation4] sm:$0xf]
    %v885 = vld [vmem:[#allocation4 + $0x4] sm:$0xf]
    %v886 = vunpack.c.l.bf16 %v884
    %v887 = vunpack.c.l.bf16 %v885
    %v888 = vadd.f32 %v871, %v886
    %v889 = vadd.f32 %v873, %v887
    %v890 = vmax.f32 %v888, 0.0
    %v891 = vmax.f32 %v889, 0.0
    %892 = vst [vmem:[#allocation10] sm:$0xff] %v890
    %893 = vst [vmem:[#allocation10 + $0x8] sm:$0xff] %v891
    %v894 = vld [vmem:[%s113] sm:$0xf]
    %v895 = vld [vmem:[%s113 + $0x4] sm:$0xf]
    %v896 = vunpack.c.l.bf16 %v894
    %v897 = vunpack.c.l.bf16 %v895
    %vm900 = vcmask 1041408
    %v901 = vrot.slane %v896, 6
    %v902 = vrot.slane %v897, 6
    %v903 = vsel %vm900, %v901, %v902
    %v907 = vadd.f32 %v876, %v901
    %v908 = vadd.f32 %v878, %v903
    %v909 = vadd.f32 %v881, %v902
    %v910 = vmax.f32 %v907, 0.0
    %v911 = vmax.f32 %v908, 0.0
    %v912 = vmax.f32 %v909, 0.0
    %s913 = scalar_lea.vmem [#allocation10], 16
    %914 = vst [vmem:[%s913 - $0x2] sm:$0xfc] %v910
    %915 = vst [vmem:[%s913 + $0x6] sm:$0xff] %v911
    %916 = vst [vmem:[%s913 + $0xe] sm:$0x3] %v912
    // Predicated region
    $region26: #{tpu_custom_call.1} parent=1 // pred_check
      _
    $region27: #{tpu_custom_call.1} parent=1 // pred_check_branch
      %918 = sbr.rel (0) target = $region29
    $region28: #{tpu_custom_call.1} parent=1 // pred_region
      %920 = vsyncadd [#allocation6], 0
      %s921 = sshll.u32 [#allocation10], 4
      %s922 = int_to_ptr.vmem [resolvable:$true] %s921
      %s923 = sshll.u32 %s3, 4
      %s924 = int_to_ptr.hbm [resolvable:$true] %s923
      %929 = dma.vmem_to_hbm [thread:$0]  %s922, 512, %s924, [#allocation6], 128, 128, 8
    $region29: #{tpu_custom_call.1} parent=1 // pred_fallthru
      _
    // Predicated region
    $region30: #{tpu_custom_call.1} parent=1 // pred_check
      _
    $region31: #{tpu_custom_call.1} parent=1 // pred_check_branch
      %931 = sbr.rel (0) target = $region33
    $region32: #{tpu_custom_call.1} parent=1 // pred_region
      %933 = dma.done [#allocation6], 512
    $region33: #{tpu_custom_call.1} parent=1 // pred_fallthru
      _
    %934 = vsyncpa [#allocation5], 1
    %935 = vsyncpa [#allocation8], 1
    %936 = vsyncpa [#allocation6], 1

</llo_original>
